<compile_context>
chip_gen: v7x
topology: tpu7x:2x2x1
jax: 0.10.0
libtpu: 0.0.40
codegen_flags: <defaults>
</compile_context>

<pallas_src>
import functools

import jax
import jax.numpy as jnp
from jax.experimental import pallas as pl
from jax.experimental.pallas import tpu as pltpu

# ----- model hyper-parameters (small, consistent with the module) -----------
INPUT_SIZE = 16
HIDDEN_SIZE = 32
NUM_LAYERS = 2
OUTPUT_SIZE = 8
BATCH = 4
SEQ_LEN = 8


def _rnn_kernel(x_ref, hinit_ref, wpack_ref, bpack_ref, out_ref, *,
                num_layers, seq_len, batch, out_size):
    """Wavefront-packed multi-layer tanh RNN + final Linear.

    x_ref     : (S*B, I)          time-major, batch-flattened input (f32)
    hinit_ref : (B, L*H)          initial hidden states [h_0 | ... | h_{L-1}] (f32)
    wpack_ref : (I + L*H + H, L*H) bf16, rows = [Wih0 (zero-padded to L*H cols);
                                   Wblock (block-bidiagonal recurrent matrix);
                                   Wout (zero-padded to L*H cols)]
    bpack_ref : (2, L*H)          f32, row 0 = [b_0 | ... | b_{L-1}] (bih+bhh),
                                   row 1 = final-linear bias (zero-padded)
    out_ref   : (B, O)            output (f32)
    """
    bf16 = jnp.bfloat16
    f32 = jnp.float32
    LH = hinit_ref.shape[1]
    H = LH // num_layers
    I = x_ref.shape[1]

    # ---- hoisted, loop-invariant loads (one `get` each) --------------------
    wih0 = wpack_ref[0:I, :]                   # (I, LH) bf16
    wblk = wpack_ref[I:I + LH, :]              # (LH, LH) bf16
    wout = wpack_ref[I + LH:I + LH + H, :]     # (H, LH) bf16
    bcat = bpack_ref[0:1, :]                   # (1, LH) f32
    bout = bpack_ref[1:2, :]                   # (1, LH) f32

    # ---- hoisted layer-0 input projection + all biases (one matmul + one
    #      broadcast add, off the recurrence critical path) ------------------
    xp = jnp.dot(x_ref[...].astype(bf16), wih0,
                 preferred_element_type=f32) + bcat            # (S*B, LH)

    # Wavefront state: hcat block l holds h_l at its own (skewed) time.
    hcat = hinit_ref[...]                                       # (B, LH) f32

    # ---- prologue: wavefront steps w = 0 .. L-2 (layers 0..w active) -------
    for w in range(num_layers - 1):
        cols = (w + 1) * H
        upd = jnp.tanh(
            xp[w * batch:(w + 1) * batch, :cols]
            + jnp.dot(hcat.astype(bf16), wblk[:, :cols],
                      preferred_element_type=f32))
        hcat = jnp.concatenate([upd, hcat[:, cols:]], axis=-1)

    # ---- steady state: ONE fused dot + tanh per wavefront step -------------
    for w in range(num_layers - 1, seq_len):
        hcat = jnp.tanh(
            xp[w * batch:(w + 1) * batch, :]
            + jnp.dot(hcat.astype(bf16), wblk, preferred_element_type=f32))

    # ---- epilogue: wavefront steps w = S .. S+L-2 (trailing layers) --------
    for w in range(seq_len, seq_len + num_layers - 1):
        c0 = (w - seq_len + 1) * H
        upd = jnp.tanh(
            bcat[:, c0:]
            + jnp.dot(hcat.astype(bf16), wblk[:, c0:],
                      preferred_element_type=f32))
        hcat = jnp.concatenate([hcat[:, :c0], upd], axis=-1)

    # TODO(synk): nn.Dropout(0.2) is stochastic in train mode; eval-mode
    # (identity) semantics are used here.

    # ---- final Linear on h_{L-1}(seq_len-1)  (== output[:, -1, :]) ---------
    last = hcat[:, (num_layers - 1) * H:]
    full = jnp.dot(last.astype(bf16), wout, preferred_element_type=f32) + bout
    out_ref[...] = full[:, :out_size]


def rnn_forward(x_bsi, h0, params):
    """x_bsi: (batch, seq, input) f32 — batch_first like the PyTorch module."""
    wih0, wihr, whh, bih, bhh, wout, bout = params
    batch, seq_len = x_bsi.shape[0], x_bsi.shape[1]
    H, L, I, O = HIDDEN_SIZE, NUM_LAYERS, INPUT_SIZE, OUTPUT_SIZE
    LH = L * H
    assert seq_len >= L, "wavefront schedule assumes seq_len >= num_layers"

    # Pad batch to 16 so bf16 matmul operands are full packed-sublane tiles.
    pad_b = (-batch) % 16
    bp = batch + pad_b
    if pad_b:
        x_bsi = jnp.pad(x_bsi, ((0, pad_b), (0, 0), (0, 0)))
        h0 = jnp.pad(h0, ((0, 0), (0, pad_b), (0, 0)))

    # Time-major + flatten (S, B) -> (S*B,) for the hoisted input projection;
    # hidden states laid out as the wavefront's (B, L*H) LHS.
    x_flat = jnp.transpose(x_bsi, (1, 0, 2)).reshape(seq_len * bp, I)
    hinit = jnp.transpose(h0, (1, 0, 2)).reshape(bp, LH)

    # ---- parameter packing --------------------------------------------------
    # Layer-0 input weights padded to LH columns (layer>=1 columns are zero,
    # so xp's layer>=1 columns carry exactly the per-layer bias).
    wih0_pad = jnp.pad(wih0, ((0, 0), (0, LH - H)))
    # Block-bidiagonal recurrent matrix: block (l,l) = Whh_l^T (stored
    # pre-transposed), block (l-1,l) = Wih_l^T for l >= 1.
    wblk = jnp.zeros((LH, LH), jnp.float32)
    for l in range(L):
        wblk = wblk.at[l * H:(l + 1) * H, l * H:(l + 1) * H].set(whh[l])
        if l >= 1:
            wblk = wblk.at[(l - 1) * H:l * H, l * H:(l + 1) * H].set(wihr[l - 1])
    wout_pad = jnp.pad(wout, ((0, 0), (0, LH - O)))
    wpack = jnp.concatenate([wih0_pad, wblk, wout_pad],
                            axis=0).astype(jnp.bfloat16)        # (I+LH+H, LH)

    bcat = (bih + bhh).reshape(1, LH)                            # pre-summed biases
    bout_pad = jnp.pad(bout, ((0, 0), (0, LH - O)))
    bpack = jnp.concatenate([bcat, bout_pad], axis=0)            # (2, LH) f32

    vmem = pl.BlockSpec(memory_space=pltpu.MemorySpace.VMEM)
    kernel = functools.partial(_rnn_kernel, num_layers=L, seq_len=seq_len,
                               batch=bp, out_size=O)

    out = pl.pallas_call(
        kernel,
        out_shape=jax.ShapeDtypeStruct((bp, O), jnp.float32),
        in_specs=[vmem] * 4,
        out_specs=vmem,
    )(x_flat, hinit, wpack, bpack)

    return out[:batch]


# ----------------------------- references -----------------------------------
def _bf16_dot(a, b):
    return jnp.dot(a.astype(jnp.bfloat16), b.astype(jnp.bfloat16),
                   preferred_element_type=jnp.float32)


def _reference_mirror(x_bsi, h0, params):
    """Pure-JAX reference mirroring the kernel's bf16-operand / f32-acc math."""
    wih0, wihr, whh, bih, bhh, wout, bout = params
    b = bih + bhh
    h = [h0[l] for l in range(NUM_LAYERS)]
    for t in range(x_bsi.shape[1]):
        inp = x_bsi[:, t, :]
        h[0] = jnp.tanh(_bf16_dot(inp, wih0) + b[0] + _bf16_dot(h[0], whh[0]))
        for l in range(1, NUM_LAYERS):
            hcat = jnp.concatenate([h[l - 1], h[l]], axis=-1)
            wcat = jnp.concatenate([wihr[l - 1], whh[l]], axis=0)
            h[l] = jnp.tanh(_bf16_dot(hcat, wcat) + b[l])
    return _bf16_dot(h[-1], wout) + bout


def _reference_f32(x_bsi, h0, params):
    """Full-f32 reference of the original module (eval-mode dropout)."""
    wih0, wihr, whh, bih, bhh, wout, bout = params
    h = [h0[l] for l in range(NUM_LAYERS)]
    for t in range(x_bsi.shape[1]):
        inp = x_bsi[:, t, :]
        h[0] = jnp.tanh(inp @ wih0 + bih[0] + h[0] @ whh[0] + bhh[0])
        for l in range(1, NUM_LAYERS):
            h[l] = jnp.tanh(h[l - 1] @ wihr[l - 1] + bih[l]
                            + h[l] @ whh[l] + bhh[l])
    return h[-1] @ wout + bout


def init_params(key):
    """Deterministic init, same shapes as nn.RNN / nn.Linear (uniform ±1/sqrt(H))."""
    ks = jax.random.split(key, 7)
    bound = 1.0 / jnp.sqrt(HIDDEN_SIZE)
    u = lambda k, shape, b: jax.random.uniform(k, shape, jnp.float32, -b, b)
    wih0 = u(ks[0], (INPUT_SIZE, HIDDEN_SIZE), bound)                    # W_ih_l0^T
    wihr = u(ks[1], (NUM_LAYERS - 1, HIDDEN_SIZE, HIDDEN_SIZE), bound)   # W_ih_l>0^T
    whh = u(ks[2], (NUM_LAYERS, HIDDEN_SIZE, HIDDEN_SIZE), bound)        # W_hh^T
    bih = u(ks[3], (NUM_LAYERS, 1, HIDDEN_SIZE), bound)
    bhh = u(ks[4], (NUM_LAYERS, 1, HIDDEN_SIZE), bound)
    wout = u(ks[5], (HIDDEN_SIZE, OUTPUT_SIZE), bound)                   # Linear W^T
    bout = u(ks[6], (1, OUTPUT_SIZE), bound)
    return (wih0, wihr, whh, bih, bhh, wout, bout)


if __name__ == "__main__":
    key = jax.random.PRNGKey(0)
    k_x, k_h, k_p = jax.random.split(key, 3)

    x = jax.random.normal(k_x, (BATCH, SEQ_LEN, INPUT_SIZE), jnp.float32)
    # h_0 = torch.randn(num_layers, batch, hidden) in the module's forward.
    h0 = jax.random.normal(k_h, (NUM_LAYERS, BATCH, HIDDEN_SIZE), jnp.float32)
    params = init_params(k_p)

    out = jax.block_until_ready(rnn_forward(x, h0, params))
    assert out.shape == (BATCH, OUTPUT_SIZE)

    ref_mirror = _reference_mirror(x, h0, params)   # same bf16-dot math
    ref_f32 = _reference_f32(x, h0, params)         # original f32 semantics
    assert jnp.allclose(out, ref_mirror, atol=1e-3, rtol=1e-3), \
        "mismatch vs bf16-matched reference"
    assert jnp.allclose(out, ref_f32, atol=1e-1), \
        "mismatch vs f32 module reference"

    print("KERNEL_OK")
</pallas_src>

<mosaic_0001>
module attributes {stable_mosaic.version = 11 : i64} {
  func.func @_rnn_kernel(%arg0: memref<128x16xf32, #tpu.memory_space<vmem>>, %arg1: memref<16x64xf32, #tpu.memory_space<vmem>>, %arg2: memref<112x64xbf16, #tpu.memory_space<vmem>>, %arg3: memref<2x64xf32, #tpu.memory_space<vmem>>, %arg4: memref<16x8xf32, #tpu.memory_space<vmem>>) attributes {dimension_semantics = [], scalar_prefetch = 0 : i64, scratch_operands = 0 : i64, tpu.core_type = #tpu.core_type<tc>} {
    %c0 = arith.constant 0 : index
    %c0_0 = arith.constant 0 : index
    %0 = vector.load %arg2[%c0, %c0_0] : memref<112x64xbf16, #tpu.memory_space<vmem>>, vector<16x64xbf16>
    %c16 = arith.constant 16 : index
    %c0_1 = arith.constant 0 : index
    %1 = vector.load %arg2[%c16, %c0_1] : memref<112x64xbf16, #tpu.memory_space<vmem>>, vector<64x64xbf16>
    %c80 = arith.constant 80 : index
    %c0_2 = arith.constant 0 : index
    %2 = vector.load %arg2[%c80, %c0_2] : memref<112x64xbf16, #tpu.memory_space<vmem>>, vector<32x64xbf16>
    %c0_3 = arith.constant 0 : index
    %c0_4 = arith.constant 0 : index
    %3 = vector.load %arg3[%c0_3, %c0_4] : memref<2x64xf32, #tpu.memory_space<vmem>>, vector<1x64xf32>
    %c1 = arith.constant 1 : index
    %c0_5 = arith.constant 0 : index
    %4 = vector.load %arg3[%c1, %c0_5] : memref<2x64xf32, #tpu.memory_space<vmem>>, vector<1x64xf32>
    %c0_6 = arith.constant 0 : index
    %c0_7 = arith.constant 0 : index
    %5 = vector.load %arg0[%c0_6, %c0_7] : memref<128x16xf32, #tpu.memory_space<vmem>>, vector<128x16xf32>
    %6 = arith.truncf %5 : vector<128x16xf32> to vector<128x16xbf16>
    %cst = arith.constant dense<0.000000e+00> : vector<128x64xf32>
    %7 = tpu.matmul %6, %0, %cst {dimension_numbers = #tpu.dot_dimension_numbers<[1], [0], [0], [1], [0, 0, 1, 1], [], []>} : vector<128x16xbf16>, vector<16x64xbf16>, vector<128x64xf32> -> vector<128x64xf32>
    %8 = vector.broadcast %3 : vector<1x64xf32> to vector<128x64xf32>
    %9 = arith.addf %7, %8 : vector<128x64xf32>
    %c0_8 = arith.constant 0 : index
    %c0_9 = arith.constant 0 : index
    %10 = vector.load %arg1[%c0_8, %c0_9] : memref<16x64xf32, #tpu.memory_space<vmem>>, vector<16x64xf32>
    %11 = vector.extract_strided_slice %9 {offsets = [0, 0], sizes = [16, 32], strides = [1, 1]} : vector<128x64xf32> to vector<16x32xf32>
    %12 = arith.truncf %10 : vector<16x64xf32> to vector<16x64xbf16>
    %13 = vector.extract_strided_slice %1 {offsets = [0, 0], sizes = [64, 32], strides = [1, 1]} : vector<64x64xbf16> to vector<64x32xbf16>
    %cst_10 = arith.constant dense<0.000000e+00> : vector<16x32xf32>
    %14 = tpu.matmul %12, %13, %cst_10 {dimension_numbers = #tpu.dot_dimension_numbers<[1], [0], [0], [1], [0, 0, 1, 1], [], []>} : vector<16x64xbf16>, vector<64x32xbf16>, vector<16x32xf32> -> vector<16x32xf32>
    %15 = arith.addf %11, %14 : vector<16x32xf32>
    %16 = math.tanh %15 : vector<16x32xf32>
    %17 = vector.extract_strided_slice %10 {offsets = [0, 32], sizes = [16, 32], strides = [1, 1]} : vector<16x64xf32> to vector<16x32xf32>
    %18 = tpu.concatenate %16, %17 in 1 : vector<16x32xf32>, vector<16x32xf32> -> vector<16x64xf32>
    %19 = vector.extract_strided_slice %9 {offsets = [16, 0], sizes = [16, 64], strides = [1, 1]} : vector<128x64xf32> to vector<16x64xf32>
    %20 = arith.truncf %18 : vector<16x64xf32> to vector<16x64xbf16>
    %cst_11 = arith.constant dense<0.000000e+00> : vector<16x64xf32>
    %21 = tpu.matmul %20, %1, %cst_11 {dimension_numbers = #tpu.dot_dimension_numbers<[1], [0], [0], [1], [0, 0, 1, 1], [], []>} : vector<16x64xbf16>, vector<64x64xbf16>, vector<16x64xf32> -> vector<16x64xf32>
    %22 = arith.addf %19, %21 : vector<16x64xf32>
    %23 = math.tanh %22 : vector<16x64xf32>
    %24 = vector.extract_strided_slice %9 {offsets = [32, 0], sizes = [16, 64], strides = [1, 1]} : vector<128x64xf32> to vector<16x64xf32>
    %25 = arith.truncf %23 : vector<16x64xf32> to vector<16x64xbf16>
    %cst_12 = arith.constant dense<0.000000e+00> : vector<16x64xf32>
    %26 = tpu.matmul %25, %1, %cst_12 {dimension_numbers = #tpu.dot_dimension_numbers<[1], [0], [0], [1], [0, 0, 1, 1], [], []>} : vector<16x64xbf16>, vector<64x64xbf16>, vector<16x64xf32> -> vector<16x64xf32>
    %27 = arith.addf %24, %26 : vector<16x64xf32>
    %28 = math.tanh %27 : vector<16x64xf32>
    %29 = vector.extract_strided_slice %9 {offsets = [48, 0], sizes = [16, 64], strides = [1, 1]} : vector<128x64xf32> to vector<16x64xf32>
    %30 = arith.truncf %28 : vector<16x64xf32> to vector<16x64xbf16>
    %cst_13 = arith.constant dense<0.000000e+00> : vector<16x64xf32>
    %31 = tpu.matmul %30, %1, %cst_13 {dimension_numbers = #tpu.dot_dimension_numbers<[1], [0], [0], [1], [0, 0, 1, 1], [], []>} : vector<16x64xbf16>, vector<64x64xbf16>, vector<16x64xf32> -> vector<16x64xf32>
    %32 = arith.addf %29, %31 : vector<16x64xf32>
    %33 = math.tanh %32 : vector<16x64xf32>
    %34 = vector.extract_strided_slice %9 {offsets = [64, 0], sizes = [16, 64], strides = [1, 1]} : vector<128x64xf32> to vector<16x64xf32>
    %35 = arith.truncf %33 : vector<16x64xf32> to vector<16x64xbf16>
    %cst_14 = arith.constant dense<0.000000e+00> : vector<16x64xf32>
    %36 = tpu.matmul %35, %1, %cst_14 {dimension_numbers = #tpu.dot_dimension_numbers<[1], [0], [0], [1], [0, 0, 1, 1], [], []>} : vector<16x64xbf16>, vector<64x64xbf16>, vector<16x64xf32> -> vector<16x64xf32>
    %37 = arith.addf %34, %36 : vector<16x64xf32>
    %38 = math.tanh %37 : vector<16x64xf32>
    %39 = vector.extract_strided_slice %9 {offsets = [80, 0], sizes = [16, 64], strides = [1, 1]} : vector<128x64xf32> to vector<16x64xf32>
    %40 = arith.truncf %38 : vector<16x64xf32> to vector<16x64xbf16>
    %cst_15 = arith.constant dense<0.000000e+00> : vector<16x64xf32>
    %41 = tpu.matmul %40, %1, %cst_15 {dimension_numbers = #tpu.dot_dimension_numbers<[1], [0], [0], [1], [0, 0, 1, 1], [], []>} : vector<16x64xbf16>, vector<64x64xbf16>, vector<16x64xf32> -> vector<16x64xf32>
    %42 = arith.addf %39, %41 : vector<16x64xf32>
    %43 = math.tanh %42 : vector<16x64xf32>
    %44 = vector.extract_strided_slice %9 {offsets = [96, 0], sizes = [16, 64], strides = [1, 1]} : vector<128x64xf32> to vector<16x64xf32>
    %45 = arith.truncf %43 : vector<16x64xf32> to vector<16x64xbf16>
    %cst_16 = arith.constant dense<0.000000e+00> : vector<16x64xf32>
    %46 = tpu.matmul %45, %1, %cst_16 {dimension_numbers = #tpu.dot_dimension_numbers<[1], [0], [0], [1], [0, 0, 1, 1], [], []>} : vector<16x64xbf16>, vector<64x64xbf16>, vector<16x64xf32> -> vector<16x64xf32>
    %47 = arith.addf %44, %46 : vector<16x64xf32>
    %48 = math.tanh %47 : vector<16x64xf32>
    %49 = vector.extract_strided_slice %9 {offsets = [112, 0], sizes = [16, 64], strides = [1, 1]} : vector<128x64xf32> to vector<16x64xf32>
    %50 = arith.truncf %48 : vector<16x64xf32> to vector<16x64xbf16>
    %cst_17 = arith.constant dense<0.000000e+00> : vector<16x64xf32>
    %51 = tpu.matmul %50, %1, %cst_17 {dimension_numbers = #tpu.dot_dimension_numbers<[1], [0], [0], [1], [0, 0, 1, 1], [], []>} : vector<16x64xbf16>, vector<64x64xbf16>, vector<16x64xf32> -> vector<16x64xf32>
    %52 = arith.addf %49, %51 : vector<16x64xf32>
    %53 = math.tanh %52 : vector<16x64xf32>
    %54 = vector.extract_strided_slice %3 {offsets = [0, 32], sizes = [1, 32], strides = [1, 1]} : vector<1x64xf32> to vector<1x32xf32>
    %55 = arith.truncf %53 : vector<16x64xf32> to vector<16x64xbf16>
    %56 = vector.extract_strided_slice %1 {offsets = [0, 32], sizes = [64, 32], strides = [1, 1]} : vector<64x64xbf16> to vector<64x32xbf16>
    %cst_18 = arith.constant dense<0.000000e+00> : vector<16x32xf32>
    %57 = tpu.matmul %55, %56, %cst_18 {dimension_numbers = #tpu.dot_dimension_numbers<[1], [0], [0], [1], [0, 0, 1, 1], [], []>} : vector<16x64xbf16>, vector<64x32xbf16>, vector<16x32xf32> -> vector<16x32xf32>
    %58 = vector.broadcast %54 : vector<1x32xf32> to vector<16x32xf32>
    %59 = arith.addf %58, %57 : vector<16x32xf32>
    %60 = math.tanh %59 : vector<16x32xf32>
    %61 = vector.extract_strided_slice %53 {offsets = [0, 0], sizes = [16, 32], strides = [1, 1]} : vector<16x64xf32> to vector<16x32xf32>
    %62 = tpu.concatenate %61, %60 in 1 : vector<16x32xf32>, vector<16x32xf32> -> vector<16x64xf32>
    %63 = vector.extract_strided_slice %62 {offsets = [0, 32], sizes = [16, 32], strides = [1, 1]} : vector<16x64xf32> to vector<16x32xf32>
    %64 = arith.truncf %63 : vector<16x32xf32> to vector<16x32xbf16>
    %cst_19 = arith.constant dense<0.000000e+00> : vector<16x64xf32>
    %65 = tpu.matmul %64, %2, %cst_19 {dimension_numbers = #tpu.dot_dimension_numbers<[1], [0], [0], [1], [0, 0, 1, 1], [], []>} : vector<16x32xbf16>, vector<32x64xbf16>, vector<16x64xf32> -> vector<16x64xf32>
    %66 = vector.broadcast %4 : vector<1x64xf32> to vector<16x64xf32>
    %67 = arith.addf %65, %66 : vector<16x64xf32>
    %68 = vector.extract_strided_slice %67 {offsets = [0, 0], sizes = [16, 8], strides = [1, 1]} : vector<16x64xf32> to vector<16x8xf32>
    %c0_20 = arith.constant 0 : index
    %c0_21 = arith.constant 0 : index
    %69 = vector.load %arg4[%c0_20, %c0_21] : memref<16x8xf32, #tpu.memory_space<vmem>>, vector<16x8xf32>
    tpu.vector_store %arg4[%c0_20, %c0_21], %68 {strides = array<i32>} : memref<16x8xf32, #tpu.memory_space<vmem>>, vector<16x8xf32>,
    return
  }
}

</mosaic_0001>

<llo_original>
// kernel: tpu_custom_call.1
$region0: #{tpu_custom_call.1}
  #allocation0 [shape = 'u32[]', space=smem, size = 0x4, offset = 0x4, fixed_abs, tag = 'smem constant byte address 0x4 - core index']
  #allocation1 [shape = 'u32[144,128]{1,0:T(1,128)}', space=vmem, size = 0x12000, scoped, tag = 'internal scratch']
  %s0 = inlined_call_operand.vmem [shape: f32[128,16], index: 0, kind: input, shape index: {}]
  %s1 = inlined_call_operand.vmem [shape: f32[16,64], index: 1, kind: input, shape index: {}]
  %s2 = inlined_call_operand.vmem [shape: bf16[112,64], index: 2, kind: input, shape index: {}]
  %s3 = inlined_call_operand.vmem [shape: f32[2,64], index: 3, kind: input, shape index: {}]
  %s4 = inlined_call_operand.vmem [shape: f32[16,8], index: 4, kind: output, shape index: {}]
  %s5 = sld [smem:[#allocation0]]
  $region26: #{tpu_custom_call.1} parent=0
    _
  %s7 = ssub.s32 1, %s5
  %s8 = scalar_select 0, %s7, %s5
  // Predicated region
  $region2: #{tpu_custom_call.1} parent=0 // pred_check
    _
  $region3: #{tpu_custom_call.1} parent=0 // pred_check_branch
    %10 = sbr.rel (0) target = $region5
  $region4: #{tpu_custom_call.1} parent=0 // pred_region
    _
  $region5: #{tpu_custom_call.1} parent=0 // pred_fallthru
    _
  // Predicated region
  $region6: #{tpu_custom_call.1} parent=0 // pred_check
    _
  $region7: #{tpu_custom_call.1} parent=0 // pred_check_branch
    %12 = sbr.rel (0) target = $region9
  $region8: #{tpu_custom_call.1} parent=0 // pred_region
    _
  $region9: #{tpu_custom_call.1} parent=0 // pred_fallthru
    _
  // Predicated region
  $region10: #{tpu_custom_call.1} parent=0 // pred_check
    _
  $region11: #{tpu_custom_call.1} parent=0 // pred_check_branch
    %14 = sbr.rel (0) target = $region13
  $region12: #{tpu_custom_call.1} parent=0 // pred_region
    _
  $region13: #{tpu_custom_call.1} parent=0 // pred_fallthru
    _
  // Predicated region
  $region14: #{tpu_custom_call.1} parent=0 // pred_check
    _
  $region15: #{tpu_custom_call.1} parent=0 // pred_check_branch
    %16 = sbr.rel (0) target = $region17
  $region16: #{tpu_custom_call.1} parent=0 // pred_region
    _
  $region17: #{tpu_custom_call.1} parent=0 // pred_fallthru
    _
  %v18 = vld [vmem:[%s2] sm:$0xf]
  %v19 = vld [vmem:[%s2 + $0x4] sm:$0xf]
  %v20 = vld [vmem:[%s2 + $0x8] sm:$0xf]
  %v21 = vld [vmem:[%s2 + $0xc] sm:$0xf]
  %v22 = vld [vmem:[%s2 + $0x10] sm:$0xf]
  %v23 = vld [vmem:[%s2 + $0x14] sm:$0xf]
  %v24 = vld [vmem:[%s2 + $0x18] sm:$0xf]
  %v25 = vld [vmem:[%s2 + $0x1c] sm:$0xf]
  %v26 = vld [vmem:[%s2 + $0x20] sm:$0xf]
  %v27 = vld [vmem:[%s2 + $0x24] sm:$0xf]
  %v28 = vld [vmem:[%s2 + $0x28] sm:$0xf]
  %v29 = vld [vmem:[%s2 + $0x2c] sm:$0xf]
  %v30 = vld [vmem:[%s2 + $0x30] sm:$0xf]
  %v31 = vld [vmem:[%s2 + $0x34] sm:$0xf]
  %v32 = vld [vmem:[%s3] sm:$0x1]
  %v33 = vld [vmem:[%s3 + $0x1] sm:$0x1]
  %v34 = vld [vmem:[%s0] sm:$0xff]
  %v35 = vld [vmem:[%s0 + $0x8] sm:$0xff]
  %v36 = vld [vmem:[%s0 + $0x10] sm:$0xff]
  %v37 = vld [vmem:[%s0 + $0x18] sm:$0xff]
  %v38 = vld [vmem:[%s0 + $0x20] sm:$0xff]
  %v39 = vld [vmem:[%s0 + $0x28] sm:$0xff]
  %v40 = vld [vmem:[%s0 + $0x30] sm:$0xff]
  %v41 = vld [vmem:[%s0 + $0x38] sm:$0xff]
  %v42 = vld [vmem:[%s0 + $0x40] sm:$0xff]
  %v43 = vld [vmem:[%s0 + $0x48] sm:$0xff]
  %v44 = vld [vmem:[%s0 + $0x50] sm:$0xff]
  %v45 = vld [vmem:[%s0 + $0x58] sm:$0xff]
  %v46 = vld [vmem:[%s0 + $0x60] sm:$0xff]
  %v47 = vld [vmem:[%s0 + $0x68] sm:$0xff]
  %v48 = vld [vmem:[%s0 + $0x70] sm:$0xff]
  %v49 = vld [vmem:[%s0 + $0x78] sm:$0xff]
  %v50 = vpack.c.bf16 %v35, %v34
  %v51 = vpack.c.bf16 %v37, %v36
  %v52 = vpack.c.bf16 %v39, %v38
  %v53 = vpack.c.bf16 %v41, %v40
  %v54 = vpack.c.bf16 %v43, %v42
  %v55 = vpack.c.bf16 %v45, %v44
  %v56 = vpack.c.bf16 %v47, %v46
  %v57 = vpack.c.bf16 %v49, %v48
  %v58 = vlaneseq
  %v59 = vshrl.u32 %v58, 7
  %v60 = vsub.s32 0, %v59
  %v61 = vrot.slane %v32, %v60
  %v64 = vunpack.c.l.b16 %v18
  %v65 = vunpack.c.l.b16 %v19
  %v66 = vpack.c.b16 %v65, %v64
  %vm68 = vcmask 130048
  %v70 = vsel %vm68, %v50, 0
  %v73 = vsel %vm68, %v51, 0
  %v76 = vsel %vm68, %v52, 0
  %v79 = vsel %vm68, %v53, 0
  %v82 = vsel %vm68, %v54, 0
  %v85 = vsel %vm68, %v55, 0
  %v88 = vsel %vm68, %v56, 0
  %v91 = vsel %vm68, %v57, 0
  %93 = vmatprep.subr.bf16.mxu0 0
  %94 = vmatpush1.bf16.msra.mxu0 %v66
  %95 = vmatprep.subr.bf16.mxu0 0
  %96 = vmatpush1.bf16.msra.mxu0 0
  %97 = vmatprep.subr.bf16.mxu0 0
  %98 = vmatpush1.bf16.msra.mxu0 0
  %99 = vmatprep.subr.bf16.mxu0 0
  %100 = vmatpush1.bf16.msra.mxu0 0
  %101 = vmatprep.subr.bf16.mxu0 0
  %102 = vmatpush1.bf16.msra.mxu0 0
  %103 = vmatprep.subr.bf16.mxu0 0
  %104 = vmatpush1.bf16.msra.mxu0 0
  %105 = vmatprep.subr.bf16.mxu0 0
  %106 = vmatpush1.bf16.msra.mxu0 0
  %107 = vmatprep.subr.bf16.mxu0 0
  %108 = vmatpush1.bf16.msra.mxu0 0
  %109 = vmatprep.subr.bf16.mxu0 0
  %110 = vmatpush1.bf16.msra.mxu0 0
  %111 = vmatprep.subr.bf16.mxu0 0
  %112 = vmatpush1.bf16.msra.mxu0 0
  %113 = vmatprep.subr.bf16.mxu0 0
  %114 = vmatpush1.bf16.msra.mxu0 0
  %115 = vmatprep.subr.bf16.mxu0 0
  %116 = vmatpush1.bf16.msra.mxu0 0
  %117 = vmatprep.subr.bf16.mxu0 0
  %118 = vmatpush1.bf16.msra.mxu0 0
  %119 = vmatprep.subr.bf16.mxu0 0
  %120 = vmatpush1.bf16.msra.mxu0 0
  %121 = vmatprep.subr.bf16.mxu0 0
  %122 = vmatpush1.bf16.msra.mxu0 0
  %123 = vmatprep.subr.bf16.mxu0 0
  %124 = vmatpush1.bf16.msra.mxu0 0
  %125 = vmatprep.mubr.bf16.mxu0 0
  %126 = vmatmul.mubr.bf16.gmra.mrb[0].mxu0 %v70
  %v127 = vpop.f32.mrb[0].mxu0
  %v128 = vadd.f32 %v61, %v127
  %v129 = vpop.f32.mrb[0].mxu0
  %v130 = vpop.f32.mrb[0].mxu0
  %v131 = vadd.f32 %v61, %v130
  %v132 = vpop.f32.mrb[0].mxu0
  %133 = vmatprep.mubr.bf16.mxu0 0
  %134 = vmatmul.mubr.bf16.gmra.mrb[0].mxu0 %v73
  %v135 = vpop.f32.mrb[0].mxu0
  %v136 = vadd.f32 %v61, %v135
  %v137 = vpop.f32.mrb[0].mxu0
  %v138 = vpop.f32.mrb[0].mxu0
  %v139 = vadd.f32 %v61, %v138
  %v140 = vpop.f32.mrb[0].mxu0
  %141 = vmatprep.mubr.bf16.mxu0 0
  %142 = vmatmul.mubr.bf16.gmra.mrb[0].mxu0 %v76
  %v143 = vpop.f32.mrb[0].mxu0
  %v144 = vadd.f32 %v61, %v143
  %v145 = vpop.f32.mrb[0].mxu0
  %v146 = vpop.f32.mrb[0].mxu0
  %v147 = vadd.f32 %v61, %v146
  %v148 = vpop.f32.mrb[0].mxu0
  %149 = vmatprep.mubr.bf16.mxu0 0
  %150 = vmatmul.mubr.bf16.gmra.mrb[0].mxu0 %v79
  %v151 = vpop.f32.mrb[0].mxu0
  %v152 = vadd.f32 %v61, %v151
  %v153 = vpop.f32.mrb[0].mxu0
  %v154 = vpop.f32.mrb[0].mxu0
  %v155 = vadd.f32 %v61, %v154
  %v156 = vpop.f32.mrb[0].mxu0
  %157 = vmatprep.mubr.bf16.mxu0 0
  %158 = vmatmul.mubr.bf16.gmra.mrb[0].mxu0 %v82
  %v159 = vpop.f32.mrb[0].mxu0
  %v160 = vadd.f32 %v61, %v159
  %v161 = vpop.f32.mrb[0].mxu0
  %v162 = vpop.f32.mrb[0].mxu0
  %v163 = vadd.f32 %v61, %v162
  %v164 = vpop.f32.mrb[0].mxu0
  %165 = vmatprep.mubr.bf16.mxu0 0
  %166 = vmatmul.mubr.bf16.gmra.mrb[0].mxu0 %v85
  %v167 = vpop.f32.mrb[0].mxu0
  %v168 = vadd.f32 %v61, %v167
  %v169 = vpop.f32.mrb[0].mxu0
  %v170 = vpop.f32.mrb[0].mxu0
  %v171 = vadd.f32 %v61, %v170
  %v172 = vpop.f32.mrb[0].mxu0
  %173 = vmatprep.mubr.bf16.mxu0 0
  %174 = vmatmul.mubr.bf16.gmra.mrb[0].mxu0 %v88
  %v175 = vpop.f32.mrb[0].mxu0
  %v176 = vadd.f32 %v61, %v175
  %v177 = vpop.f32.mrb[0].mxu0
  %v178 = vpop.f32.mrb[0].mxu0
  %v179 = vadd.f32 %v61, %v178
  %v180 = vpop.f32.mrb[0].mxu0
  %181 = vmatprep.mubr.bf16.mxu0 0
  %182 = vmatmul.mubr.bf16.gmra.mrb[0].mxu0 %v91
  %v183 = vpop.f32.mrb[0].mxu0
  %v184 = vadd.f32 %v61, %v183
  %v185 = vpop.f32.mrb[0].mxu0
  %v186 = vpop.f32.mrb[0].mxu0
  %v187 = vadd.f32 %v61, %v186
  %v188 = vpop.f32.mrb[0].mxu0
  %189 = vdwg.mxu0
  %v190 = vld [vmem:[%s1] sm:$0xff]
  %v191 = vld [vmem:[%s1 + $0x8] sm:$0xff]
  %v192 = vpack.c.bf16 %v191, %v190
  %v201 = vunpack.c.l.b16 %v20
  %v202 = vunpack.c.l.b16 %v21
  %v203 = vunpack.c.l.b16 %v22
  %v204 = vunpack.c.l.b16 %v23
  %v205 = vunpack.c.l.b16 %v24
  %v206 = vunpack.c.l.b16 %v25
  %v207 = vunpack.c.l.b16 %v26
  %v208 = vunpack.c.l.b16 %v27
  %v209 = vpack.c.b16 %v202, %v201
  %v210 = vpack.c.b16 %v204, %v203
  %v211 = vpack.c.b16 %v206, %v205
  %v212 = vpack.c.b16 %v208, %v207
  %vm217 = vcmask 523264
  %v219 = vsel %vm217, %v192, 0
  %221 = vmatprep.subr.bf16.mxu0 0
  %222 = vmatpush1.bf16.msra.mxu0 %v209
  %223 = vmatprep.subr.bf16.mxu0 0
  %224 = vmatpush1.bf16.msra.mxu0 %v210
  %225 = vmatprep.subr.bf16.mxu0 0
  %226 = vmatpush1.bf16.msra.mxu0 %v211
  %227 = vmatprep.subr.bf16.mxu0 0
  %228 = vmatpush1.bf16.msra.mxu0 %v212
  %229 = vmatprep.subr.bf16.mxu0 0
  %230 = vmatpush1.bf16.msra.mxu0 0
  %231 = vmatprep.subr.bf16.mxu0 0
  %232 = vmatpush1.bf16.msra.mxu0 0
  %233 = vmatprep.subr.bf16.mxu0 0
  %234 = vmatpush1.bf16.msra.mxu0 0
  %235 = vmatprep.subr.bf16.mxu0 0
  %236 = vmatpush1.bf16.msra.mxu0 0
  %237 = vmatprep.subr.bf16.mxu0 0
  %238 = vmatpush1.bf16.msra.mxu0 0
  %239 = vmatprep.subr.bf16.mxu0 0
  %240 = vmatpush1.bf16.msra.mxu0 0
  %241 = vmatprep.subr.bf16.mxu0 0
  %242 = vmatpush1.bf16.msra.mxu0 0
  %243 = vmatprep.subr.bf16.mxu0 0
  %244 = vmatpush1.bf16.msra.mxu0 0
  %245 = vmatprep.subr.bf16.mxu0 0
  %246 = vmatpush1.bf16.msra.mxu0 0
  %247 = vmatprep.subr.bf16.mxu0 0
  %248 = vmatpush1.bf16.msra.mxu0 0
  %249 = vmatprep.subr.bf16.mxu0 0
  %250 = vmatpush1.bf16.msra.mxu0 0
  %251 = vmatprep.subr.bf16.mxu0 0
  %252 = vmatpush1.bf16.msra.mxu0 0
  %253 = vmatprep.mubr.bf16.mxu0 0
  %254 = vmatmul.mubr.bf16.gmra.mrb[0].mxu0 %v219
  %v255 = vpop.f32.mrb[0].mxu0
  %v256 = vadd.f32 0.0, %v255
  %v257 = vpop.f32.mrb[0].mxu0
  %v258 = vpop.f32.mrb[0].mxu0
  %v259 = vadd.f32 0.0, %v258
  %v260 = vpop.f32.mrb[0].mxu0
  %261 = vdwg.mxu0
  %v262 = vadd.f32 %v128, %v256
  %v263 = vadd.f32 %v131, %v259
  %v264 = vtanh.pop %v262
  %v265 = vtanh.pop %v263
  %vm266 = vcmask 261120
  %v267 = vsel %vm266, %v264, %v190
  %v268 = vsel %vm266, %v265, %v191
  %v269 = vpack.c.bf16 %v268, %v267
  %v271 = vsel %vm217, %v269, 0
  %273 = vmatprep.subr.bf16.mxu0 0
  %274 = vmatpush1.bf16.msra.mxu0 %v209
  %275 = vmatprep.subr.bf16.mxu0 0
  %276 = vmatpush1.bf16.msra.mxu0 %v210
  %277 = vmatprep.subr.bf16.mxu0 0
  %278 = vmatpush1.bf16.msra.mxu0 %v211
  %279 = vmatprep.subr.bf16.mxu0 0
  %280 = vmatpush1.bf16.msra.mxu0 %v212
  %281 = vmatprep.subr.bf16.mxu0 0
  %282 = vmatpush1.bf16.msra.mxu0 0
  %283 = vmatprep.subr.bf16.mxu0 0
  %284 = vmatpush1.bf16.msra.mxu0 0
  %285 = vmatprep.subr.bf16.mxu0 0
  %286 = vmatpush1.bf16.msra.mxu0 0
  %287 = vmatprep.subr.bf16.mxu0 0
  %288 = vmatpush1.bf16.msra.mxu0 0
  %289 = vmatprep.subr.bf16.mxu0 0
  %290 = vmatpush1.bf16.msra.mxu0 0
  %291 = vmatprep.subr.bf16.mxu0 0
  %292 = vmatpush1.bf16.msra.mxu0 0
  %293 = vmatprep.subr.bf16.mxu0 0
  %294 = vmatpush1.bf16.msra.mxu0 0
  %295 = vmatprep.subr.bf16.mxu0 0
  %296 = vmatpush1.bf16.msra.mxu0 0
  %297 = vmatprep.subr.bf16.mxu0 0
  %298 = vmatpush1.bf16.msra.mxu0 0
  %299 = vmatprep.subr.bf16.mxu0 0
  %300 = vmatpush1.bf16.msra.mxu0 0
  %301 = vmatprep.subr.bf16.mxu0 0
  %302 = vmatpush1.bf16.msra.mxu0 0
  %303 = vmatprep.subr.bf16.mxu0 0
  %304 = vmatpush1.bf16.msra.mxu0 0
  %305 = vmatprep.mubr.bf16.mxu0 0
  %306 = vmatmul.mubr.bf16.gmra.mrb[0].mxu0 %v271
  %v307 = vpop.f32.mrb[0].mxu0
  %v308 = vadd.f32 0.0, %v307
  %v309 = vpop.f32.mrb[0].mxu0
  %v310 = vpop.f32.mrb[0].mxu0
  %v311 = vadd.f32 0.0, %v310
  %v312 = vpop.f32.mrb[0].mxu0
  %313 = vdwg.mxu0
  %v314 = vadd.f32 %v136, %v308
  %v315 = vadd.f32 %v139, %v311
  %v316 = vtanh.pop %v314
  %v317 = vtanh.pop %v315
  %v318 = vpack.c.bf16 %v317, %v316
  %v320 = vsel %vm217, %v318, 0
  %322 = vmatprep.subr.bf16.mxu0 0
  %323 = vmatpush1.bf16.msra.mxu0 %v209
  %324 = vmatprep.subr.bf16.mxu0 0
  %325 = vmatpush1.bf16.msra.mxu0 %v210
  %326 = vmatprep.subr.bf16.mxu0 0
  %327 = vmatpush1.bf16.msra.mxu0 %v211
  %328 = vmatprep.subr.bf16.mxu0 0
  %329 = vmatpush1.bf16.msra.mxu0 %v212
  %330 = vmatprep.subr.bf16.mxu0 0
  %331 = vmatpush1.bf16.msra.mxu0 0
  %332 = vmatprep.subr.bf16.mxu0 0
  %333 = vmatpush1.bf16.msra.mxu0 0
  %334 = vmatprep.subr.bf16.mxu0 0
  %335 = vmatpush1.bf16.msra.mxu0 0
  %336 = vmatprep.subr.bf16.mxu0 0
  %337 = vmatpush1.bf16.msra.mxu0 0
  %338 = vmatprep.subr.bf16.mxu0 0
  %339 = vmatpush1.bf16.msra.mxu0 0
  %340 = vmatprep.subr.bf16.mxu0 0
  %341 = vmatpush1.bf16.msra.mxu0 0
  %342 = vmatprep.subr.bf16.mxu0 0
  %343 = vmatpush1.bf16.msra.mxu0 0
  %344 = vmatprep.subr.bf16.mxu0 0
  %345 = vmatpush1.bf16.msra.mxu0 0
  %346 = vmatprep.subr.bf16.mxu0 0
  %347 = vmatpush1.bf16.msra.mxu0 0
  %348 = vmatprep.subr.bf16.mxu0 0
  %349 = vmatpush1.bf16.msra.mxu0 0
  %350 = vmatprep.subr.bf16.mxu0 0
  %351 = vmatpush1.bf16.msra.mxu0 0
  %352 = vmatprep.subr.bf16.mxu0 0
  %353 = vmatpush1.bf16.msra.mxu0 0
  %354 = vmatprep.mubr.bf16.mxu0 0
  %355 = vmatmul.mubr.bf16.gmra.mrb[0].mxu0 %v320
  %v356 = vpop.f32.mrb[0].mxu0
  %v357 = vadd.f32 0.0, %v356
  %v358 = vpop.f32.mrb[0].mxu0
  %v359 = vpop.f32.mrb[0].mxu0
  %v360 = vadd.f32 0.0, %v359
  %v361 = vpop.f32.mrb[0].mxu0
  %362 = vdwg.mxu0
  %v363 = vadd.f32 %v144, %v357
  %v364 = vadd.f32 %v147, %v360
  %v365 = vtanh.pop %v363
  %v366 = vtanh.pop %v364
  %v367 = vpack.c.bf16 %v366, %v365
  %v369 = vsel %vm217, %v367, 0
  %371 = vmatprep.subr.bf16.mxu0 0
  %372 = vmatpush1.bf16.msra.mxu0 %v209
  %373 = vmatprep.subr.bf16.mxu0 0
  %374 = vmatpush1.bf16.msra.mxu0 %v210
  %375 = vmatprep.subr.bf16.mxu0 0
  %376 = vmatpush1.bf16.msra.mxu0 %v211
  %377 = vmatprep.subr.bf16.mxu0 0
  %378 = vmatpush1.bf16.msra.mxu0 %v212
  %379 = vmatprep.subr.bf16.mxu0 0
  %380 = vmatpush1.bf16.msra.mxu0 0
  %381 = vmatprep.subr.bf16.mxu0 0
  %382 = vmatpush1.bf16.msra.mxu0 0
  %383 = vmatprep.subr.bf16.mxu0 0
  %384 = vmatpush1.bf16.msra.mxu0 0
  %385 = vmatprep.subr.bf16.mxu0 0
  %386 = vmatpush1.bf16.msra.mxu0 0
  %387 = vmatprep.subr.bf16.mxu0 0
  %388 = vmatpush1.bf16.msra.mxu0 0
  %389 = vmatprep.subr.bf16.mxu0 0
  %390 = vmatpush1.bf16.msra.mxu0 0
  %391 = vmatprep.subr.bf16.mxu0 0
  %392 = vmatpush1.bf16.msra.mxu0 0
  %393 = vmatprep.subr.bf16.mxu0 0
  %394 = vmatpush1.bf16.msra.mxu0 0
  %395 = vmatprep.subr.bf16.mxu0 0
  %396 = vmatpush1.bf16.msra.mxu0 0
  %397 = vmatprep.subr.bf16.mxu0 0
  %398 = vmatpush1.bf16.msra.mxu0 0
  %399 = vmatprep.subr.bf16.mxu0 0
  %400 = vmatpush1.bf16.msra.mxu0 0
  %401 = vmatprep.subr.bf16.mxu0 0
  %402 = vmatpush1.bf16.msra.mxu0 0
  %403 = vmatprep.mubr.bf16.mxu0 0
  %404 = vmatmul.mubr.bf16.gmra.mrb[0].mxu0 %v369
  %v405 = vpop.f32.mrb[0].mxu0
  %v406 = vadd.f32 0.0, %v405
  %v407 = vpop.f32.mrb[0].mxu0
  %v408 = vpop.f32.mrb[0].mxu0
  %v409 = vadd.f32 0.0, %v408
  %v410 = vpop.f32.mrb[0].mxu0
  %411 = vdwg.mxu0
  %v412 = vadd.f32 %v152, %v406
  %v413 = vadd.f32 %v155, %v409
  %v414 = vtanh.pop %v412
  %v415 = vtanh.pop %v413
  %v416 = vpack.c.bf16 %v415, %v414
  %v418 = vsel %vm217, %v416, 0
  %420 = vmatprep.subr.bf16.mxu0 0
  %421 = vmatpush1.bf16.msra.mxu0 %v209
  %422 = vmatprep.subr.bf16.mxu0 0
  %423 = vmatpush1.bf16.msra.mxu0 %v210
  %424 = vmatprep.subr.bf16.mxu0 0
  %425 = vmatpush1.bf16.msra.mxu0 %v211
  %426 = vmatprep.subr.bf16.mxu0 0
  %427 = vmatpush1.bf16.msra.mxu0 %v212
  %428 = vmatprep.subr.bf16.mxu0 0
  %429 = vmatpush1.bf16.msra.mxu0 0
  %430 = vmatprep.subr.bf16.mxu0 0
  %431 = vmatpush1.bf16.msra.mxu0 0
  %432 = vmatprep.subr.bf16.mxu0 0
  %433 = vmatpush1.bf16.msra.mxu0 0
  %434 = vmatprep.subr.bf16.mxu0 0
  %435 = vmatpush1.bf16.msra.mxu0 0
  %436 = vmatprep.subr.bf16.mxu0 0
  %437 = vmatpush1.bf16.msra.mxu0 0
  %438 = vmatprep.subr.bf16.mxu0 0
  %439 = vmatpush1.bf16.msra.mxu0 0
  %440 = vmatprep.subr.bf16.mxu0 0
  %441 = vmatpush1.bf16.msra.mxu0 0
  %442 = vmatprep.subr.bf16.mxu0 0
  %443 = vmatpush1.bf16.msra.mxu0 0
  %444 = vmatprep.subr.bf16.mxu0 0
  %445 = vmatpush1.bf16.msra.mxu0 0
  %446 = vmatprep.subr.bf16.mxu0 0
  %447 = vmatpush1.bf16.msra.mxu0 0
  %448 = vmatprep.subr.bf16.mxu0 0
  %449 = vmatpush1.bf16.msra.mxu0 0
  %450 = vmatprep.subr.bf16.mxu0 0
  %451 = vmatpush1.bf16.msra.mxu0 0
  %452 = vmatprep.mubr.bf16.mxu0 0
  %453 = vmatmul.mubr.bf16.gmra.mrb[0].mxu0 %v418
  %v454 = vpop.f32.mrb[0].mxu0
  %v455 = vadd.f32 0.0, %v454
  %v456 = vpop.f32.mrb[0].mxu0
  %v457 = vpop.f32.mrb[0].mxu0
  %v458 = vadd.f32 0.0, %v457
  %v459 = vpop.f32.mrb[0].mxu0
  %460 = vdwg.mxu0
  %v461 = vadd.f32 %v160, %v455
  %v462 = vadd.f32 %v163, %v458
  %v463 = vtanh.pop %v461
  %v464 = vtanh.pop %v462
  %v465 = vpack.c.bf16 %v464, %v463
  %v467 = vsel %vm217, %v465, 0
  %469 = vmatprep.subr.bf16.mxu0 0
  %470 = vmatpush1.bf16.msra.mxu0 %v209
  %471 = vmatprep.subr.bf16.mxu0 0
  %472 = vmatpush1.bf16.msra.mxu0 %v210
  %473 = vmatprep.subr.bf16.mxu0 0
  %474 = vmatpush1.bf16.msra.mxu0 %v211
  %475 = vmatprep.subr.bf16.mxu0 0
  %476 = vmatpush1.bf16.msra.mxu0 %v212
  %477 = vmatprep.subr.bf16.mxu0 0
  %478 = vmatpush1.bf16.msra.mxu0 0
  %479 = vmatprep.subr.bf16.mxu0 0
  %480 = vmatpush1.bf16.msra.mxu0 0
  %481 = vmatprep.subr.bf16.mxu0 0
  %482 = vmatpush1.bf16.msra.mxu0 0
  %483 = vmatprep.subr.bf16.mxu0 0
  %484 = vmatpush1.bf16.msra.mxu0 0
  %485 = vmatprep.subr.bf16.mxu0 0
  %486 = vmatpush1.bf16.msra.mxu0 0
  %487 = vmatprep.subr.bf16.mxu0 0
  %488 = vmatpush1.bf16.msra.mxu0 0
  %489 = vmatprep.subr.bf16.mxu0 0
  %490 = vmatpush1.bf16.msra.mxu0 0
  %491 = vmatprep.subr.bf16.mxu0 0
  %492 = vmatpush1.bf16.msra.mxu0 0
  %493 = vmatprep.subr.bf16.mxu0 0
  %494 = vmatpush1.bf16.msra.mxu0 0
  %495 = vmatprep.subr.bf16.mxu0 0
  %496 = vmatpush1.bf16.msra.mxu0 0
  %497 = vmatprep.subr.bf16.mxu0 0
  %498 = vmatpush1.bf16.msra.mxu0 0
  %499 = vmatprep.subr.bf16.mxu0 0
  %500 = vmatpush1.bf16.msra.mxu0 0
  %501 = vmatprep.mubr.bf16.mxu0 0
  %502 = vmatmul.mubr.bf16.gmra.mrb[0].mxu0 %v467
  %v503 = vpop.f32.mrb[0].mxu0
  %v504 = vadd.f32 0.0, %v503
  %v505 = vpop.f32.mrb[0].mxu0
  %v506 = vpop.f32.mrb[0].mxu0
  %v507 = vadd.f32 0.0, %v506
  %v508 = vpop.f32.mrb[0].mxu0
  %509 = vdwg.mxu0
  %v510 = vadd.f32 %v168, %v504
  %v511 = vadd.f32 %v171, %v507
  %v512 = vtanh.pop %v510
  %v513 = vtanh.pop %v511
  %v514 = vpack.c.bf16 %v513, %v512
  %v516 = vsel %vm217, %v514, 0
  %518 = vmatprep.subr.bf16.mxu0 0
  %519 = vmatpush1.bf16.msra.mxu0 %v209
  %520 = vmatprep.subr.bf16.mxu0 0
  %521 = vmatpush1.bf16.msra.mxu0 %v210
  %522 = vmatprep.subr.bf16.mxu0 0
  %523 = vmatpush1.bf16.msra.mxu0 %v211
  %524 = vmatprep.subr.bf16.mxu0 0
  %525 = vmatpush1.bf16.msra.mxu0 %v212
  %526 = vmatprep.subr.bf16.mxu0 0
  %527 = vmatpush1.bf16.msra.mxu0 0
  %528 = vmatprep.subr.bf16.mxu0 0
  %529 = vmatpush1.bf16.msra.mxu0 0
  %530 = vmatprep.subr.bf16.mxu0 0
  %531 = vmatpush1.bf16.msra.mxu0 0
  %532 = vmatprep.subr.bf16.mxu0 0
  %533 = vmatpush1.bf16.msra.mxu0 0
  %534 = vmatprep.subr.bf16.mxu0 0
  %535 = vmatpush1.bf16.msra.mxu0 0
  %536 = vmatprep.subr.bf16.mxu0 0
  %537 = vmatpush1.bf16.msra.mxu0 0
  %538 = vmatprep.subr.bf16.mxu0 0
  %539 = vmatpush1.bf16.msra.mxu0 0
  %540 = vmatprep.subr.bf16.mxu0 0
  %541 = vmatpush1.bf16.msra.mxu0 0
  %542 = vmatprep.subr.bf16.mxu0 0
  %543 = vmatpush1.bf16.msra.mxu0 0
  %544 = vmatprep.subr.bf16.mxu0 0
  %545 = vmatpush1.bf16.msra.mxu0 0
  %546 = vmatprep.subr.bf16.mxu0 0
  %547 = vmatpush1.bf16.msra.mxu0 0
  %548 = vmatprep.subr.bf16.mxu0 0
  %549 = vmatpush1.bf16.msra.mxu0 0
  %550 = vmatprep.mubr.bf16.mxu0 0
  %551 = vmatmul.mubr.bf16.gmra.mrb[0].mxu0 %v516
  %v552 = vpop.f32.mrb[0].mxu0
  %v553 = vadd.f32 0.0, %v552
  %v554 = vpop.f32.mrb[0].mxu0
  %v555 = vpop.f32.mrb[0].mxu0
  %v556 = vadd.f32 0.0, %v555
  %v557 = vpop.f32.mrb[0].mxu0
  %558 = vdwg.mxu0
  %v559 = vadd.f32 %v176, %v553
  %v560 = vadd.f32 %v179, %v556
  %v561 = vtanh.pop %v559
  %v562 = vtanh.pop %v560
  %v563 = vpack.c.bf16 %v562, %v561
  %v565 = vsel %vm217, %v563, 0
  %567 = vmatprep.subr.bf16.mxu0 0
  %568 = vmatpush1.bf16.msra.mxu0 %v209
  %569 = vmatprep.subr.bf16.mxu0 0
  %570 = vmatpush1.bf16.msra.mxu0 %v210
  %571 = vmatprep.subr.bf16.mxu0 0
  %572 = vmatpush1.bf16.msra.mxu0 %v211
  %573 = vmatprep.subr.bf16.mxu0 0
  %574 = vmatpush1.bf16.msra.mxu0 %v212
  %575 = vmatprep.subr.bf16.mxu0 0
  %576 = vmatpush1.bf16.msra.mxu0 0
  %577 = vmatprep.subr.bf16.mxu0 0
  %578 = vmatpush1.bf16.msra.mxu0 0
  %579 = vmatprep.subr.bf16.mxu0 0
  %580 = vmatpush1.bf16.msra.mxu0 0
  %581 = vmatprep.subr.bf16.mxu0 0
  %582 = vmatpush1.bf16.msra.mxu0 0
  %583 = vmatprep.subr.bf16.mxu0 0
  %584 = vmatpush1.bf16.msra.mxu0 0
  %585 = vmatprep.subr.bf16.mxu0 0
  %586 = vmatpush1.bf16.msra.mxu0 0
  %587 = vmatprep.subr.bf16.mxu0 0
  %588 = vmatpush1.bf16.msra.mxu0 0
  %589 = vmatprep.subr.bf16.mxu0 0
  %590 = vmatpush1.bf16.msra.mxu0 0
  %591 = vmatprep.subr.bf16.mxu0 0
  %592 = vmatpush1.bf16.msra.mxu0 0
  %593 = vmatprep.subr.bf16.mxu0 0
  %594 = vmatpush1.bf16.msra.mxu0 0
  %595 = vmatprep.subr.bf16.mxu0 0
  %596 = vmatpush1.bf16.msra.mxu0 0
  %597 = vmatprep.subr.bf16.mxu0 0
  %598 = vmatpush1.bf16.msra.mxu0 0
  %599 = vmatprep.mubr.bf16.mxu0 0
  %600 = vmatmul.mubr.bf16.gmra.mrb[0].mxu0 %v565
  %v601 = vpop.f32.mrb[0].mxu0
  %v602 = vadd.f32 0.0, %v601
  %v603 = vpop.f32.mrb[0].mxu0
  %v604 = vpop.f32.mrb[0].mxu0
  %v605 = vadd.f32 0.0, %v604
  %v606 = vpop.f32.mrb[0].mxu0
  %607 = vdwg.mxu0
  %v608 = vadd.f32 %v184, %v602
  %v609 = vadd.f32 %v187, %v605
  %v610 = vtanh.pop %v608
  %v611 = vtanh.pop %v609
  %v612 = vpack.c.bf16 %v611, %v610
  %613 = vrot.lane.b32.xlu0 %v209, 96
  %v614 = vpop.permute.xlu0 %613
  %615 = vrot.lane.b32.xlu0 %v210, 96
  %v616 = vpop.permute.xlu0 %615
  %617 = vrot.lane.b32.xlu0 %v211, 96
  %v618 = vpop.permute.xlu0 %617
  %619 = vrot.lane.b32.xlu0 %v212, 96
  %v620 = vpop.permute.xlu0 %619
  %v626 = vsel %vm217, %v612, 0
  %628 = vmatprep.subr.bf16.mxu0 0
  %629 = vmatpush1.bf16.msra.mxu0 %v614
  %630 = vmatprep.subr.bf16.mxu0 0
  %631 = vmatpush1.bf16.msra.mxu0 %v616
  %632 = vmatprep.subr.bf16.mxu0 0
  %633 = vmatpush1.bf16.msra.mxu0 %v618
  %634 = vmatprep.subr.bf16.mxu0 0
  %635 = vmatpush1.bf16.msra.mxu0 %v620
  %636 = vmatprep.subr.bf16.mxu0 0
  %637 = vmatpush1.bf16.msra.mxu0 0
  %638 = vmatprep.subr.bf16.mxu0 0
  %639 = vmatpush1.bf16.msra.mxu0 0
  %640 = vmatprep.subr.bf16.mxu0 0
  %641 = vmatpush1.bf16.msra.mxu0 0
  %642 = vmatprep.subr.bf16.mxu0 0
  %643 = vmatpush1.bf16.msra.mxu0 0
  %644 = vmatprep.subr.bf16.mxu0 0
  %645 = vmatpush1.bf16.msra.mxu0 0
  %646 = vmatprep.subr.bf16.mxu0 0
  %647 = vmatpush1.bf16.msra.mxu0 0
  %648 = vmatprep.subr.bf16.mxu0 0
  %649 = vmatpush1.bf16.msra.mxu0 0
  %650 = vmatprep.subr.bf16.mxu0 0
  %651 = vmatpush1.bf16.msra.mxu0 0
  %652 = vmatprep.subr.bf16.mxu0 0
  %653 = vmatpush1.bf16.msra.mxu0 0
  %654 = vmatprep.subr.bf16.mxu0 0
  %655 = vmatpush1.bf16.msra.mxu0 0
  %656 = vmatprep.subr.bf16.mxu0 0
  %657 = vmatpush1.bf16.msra.mxu0 0
  %658 = vmatprep.subr.bf16.mxu0 0
  %659 = vmatpush1.bf16.msra.mxu0 0
  %660 = vmatprep.mubr.bf16.mxu0 0
  %661 = vmatmul.mubr.bf16.gmra.mrb[0].mxu0 %v626
  %v662 = vpop.f32.mrb[0].mxu0
  %v663 = vadd.f32 0.0, %v662
  %v664 = vpop.f32.mrb[0].mxu0
  %v665 = vpop.f32.mrb[0].mxu0
  %v666 = vadd.f32 0.0, %v665
  %v667 = vpop.f32.mrb[0].mxu0
  %668 = vdwg.mxu0
  %671 = vrot.lane.b32.xlu0 %v663, 32
  %v672 = vpop.permute.xlu0 %671
  %673 = vrot.lane.b32.xlu0 %v666, 32
  %v674 = vpop.permute.xlu0 %673
  %v677 = vadd.f32 %v61, %v672
  %v678 = vadd.f32 %v61, %v674
  %v679 = vtanh.pop %v677
  %v680 = vtanh.pop %v678
  %v681 = vsel %vm266, %v610, %v679
  %v682 = vsel %vm266, %v611, %v680
  %v683 = vpack.c.bf16 %v682, %v681
  %v684 = vlaneseq
  %v685 = vshrl.u32 %v684, 7
  %v686 = vsub.s32 0, %v685
  %v687 = vrot.slane %v33, %v686
  %689 = vrot.lane.b32.xlu0 %v683, 96
  %v690 = vpop.permute.xlu0 %689
  %v695 = vunpack.c.l.b16 %v28
  %v696 = vunpack.c.l.b16 %v29
  %v697 = vunpack.c.l.b16 %v30
  %v698 = vunpack.c.l.b16 %v31
  %v699 = vpack.c.b16 %v696, %v695
  %v700 = vpack.c.b16 %v698, %v697
  %v704 = vsel %vm266, %v690, 0
  %706 = vmatprep.subr.bf16.mxu0 0
  %707 = vmatpush1.bf16.msra.mxu0 %v699
  %708 = vmatprep.subr.bf16.mxu0 0
  %709 = vmatpush1.bf16.msra.mxu0 %v700
  %710 = vmatprep.subr.bf16.mxu0 0
  %711 = vmatpush1.bf16.msra.mxu0 0
  %712 = vmatprep.subr.bf16.mxu0 0
  %713 = vmatpush1.bf16.msra.mxu0 0
  %714 = vmatprep.subr.bf16.mxu0 0
  %715 = vmatpush1.bf16.msra.mxu0 0
  %716 = vmatprep.subr.bf16.mxu0 0
  %717 = vmatpush1.bf16.msra.mxu0 0
  %718 = vmatprep.subr.bf16.mxu0 0
  %719 = vmatpush1.bf16.msra.mxu0 0
  %720 = vmatprep.subr.bf16.mxu0 0
  %721 = vmatpush1.bf16.msra.mxu0 0
  %722 = vmatprep.subr.bf16.mxu0 0
  %723 = vmatpush1.bf16.msra.mxu0 0
  %724 = vmatprep.subr.bf16.mxu0 0
  %725 = vmatpush1.bf16.msra.mxu0 0
  %726 = vmatprep.subr.bf16.mxu0 0
  %727 = vmatpush1.bf16.msra.mxu0 0
  %728 = vmatprep.subr.bf16.mxu0 0
  %729 = vmatpush1.bf16.msra.mxu0 0
  %730 = vmatprep.subr.bf16.mxu0 0
  %731 = vmatpush1.bf16.msra.mxu0 0
  %732 = vmatprep.subr.bf16.mxu0 0
  %733 = vmatpush1.bf16.msra.mxu0 0
  %734 = vmatprep.subr.bf16.mxu0 0
  %735 = vmatpush1.bf16.msra.mxu0 0
  %736 = vmatprep.subr.bf16.mxu0 0
  %737 = vmatpush1.bf16.msra.mxu0 0
  %738 = vmatprep.mubr.bf16.mxu0 0
  %739 = vmatmul.mubr.bf16.gmra.mrb[0].mxu0 %v704
  %v740 = vpop.f32.mrb[0].mxu0
  %v741 = vadd.f32 %v687, %v740
  %v742 = vpop.f32.mrb[0].mxu0
  %v743 = vpop.f32.mrb[0].mxu0
  %v744 = vadd.f32 %v687, %v743
  %v745 = vpop.f32.mrb[0].mxu0
  %746 = vdwg.mxu0
  %vm747 = vcmask 64512
  %748 = vst.msk [vmem:[%s4] sm:$0xff] %vm747, %v741
  %749 = vst.msk [vmem:[%s4 + $0x8] sm:$0xff] %vm747, %v744
  // Predicated region
  $region18: #{tpu_custom_call.1} parent=0 // pred_check
    _
  $region19: #{tpu_custom_call.1} parent=0 // pred_check_branch
    %751 = sbr.rel (0) target = $region21
  $region20: #{tpu_custom_call.1} parent=0 // pred_region
    _
  $region21: #{tpu_custom_call.1} parent=0 // pred_fallthru
    _
  // Predicated region
  $region22: #{tpu_custom_call.1} parent=0 // pred_check
    _
  $region23: #{tpu_custom_call.1} parent=0 // pred_check_branch
    %753 = sbr.rel (0) target = $region25
  $region24: #{tpu_custom_call.1} parent=0 // pred_region
    _
  $region25: #{tpu_custom_call.1} parent=0 // pred_fallthru
    _

</llo_original>
